<compile_context>
chip_gen: v6e
topology: v6e:2x2x1
jax: 0.10.0
libtpu: 0.0.40
codegen_flags: <defaults>
</compile_context>

<pallas_src>
import functools

import jax
import jax.numpy as jnp
from jax.experimental import pallas as pl
from jax.experimental.pallas import tpu as pltpu


def _pick_lane_tile(L, target=512):
    """Lane-dim tile: full L if small or indivisible, else a multiple of 128."""
    if L <= target:
        return L
    for tl in range(target, 127, -128):
        if L % tl == 0:
            return tl
    # Fall back to the full lane extent (always legal; avoids partial/masked
    # stores when H*W is not a multiple of 128).
    return L


def _mean_center_axis0_kernel(x_ref, o_ref, *, inv_n):
    # x_ref/o_ref: (N, C, TL). Reduce over the leading (batch) axis — cheap
    # lockstep VPU adds, no XLU cross-lane work.
    x = x_ref[...]
    m = jnp.sum(x.astype(jnp.float32), axis=0, keepdims=True) * inv_n
    o_ref[...] = (x.astype(jnp.float32) - m).astype(o_ref.dtype)


def _mean_center_axis1_kernel(x0_ref, x_ref, o_ref, *, inv_c):
    # x0_ref: (1, C, TL) slice of batch 0 (only batch 0's channel-mean is used,
    # matching the PyTorch `[0]` indexing). x_ref/o_ref: (1, C, TL) of batch n.
    m = jnp.sum(x0_ref[...].astype(jnp.float32), axis=1, keepdims=True) * inv_c
    o_ref[...] = (x_ref[...].astype(jnp.float32) - m).astype(o_ref.dtype)


def mean_center(x, axis, *, lane_tile=512):
    """x: (N, C, H, W). Supports axis in {0, 1} (batch / channel)."""
    if axis not in (0, 1):
        # TODO(synk): spatial-axis (H/W) reduction would need a different
        # flattening; only batch/channel axes are implemented here.
        raise NotImplementedError("mean_center kernel supports axis 0 or 1")

    n, c, h, w = x.shape
    L = h * w
    x3 = x.reshape(n, c, L)  # glue reshape in plain JAX (lane axis = H*W)
    tl = _pick_lane_tile(L, lane_tile)
    itemsize = jnp.dtype(x3.dtype).itemsize

    if axis == 0:
        grid = (L // tl,)
        block = (n, c, tl)
        in_specs = [pl.BlockSpec(block, lambda l: (0, 0, l))]
        out_specs = pl.BlockSpec(block, lambda l: (0, 0, l))
        kernel = functools.partial(_mean_center_axis0_kernel, inv_n=1.0 / n)
        operands = (x3,)
        block_bytes = 2 * n * c * tl * itemsize          # in + out blocks
    else:  # axis == 1
        grid = (n, L // tl)
        in_specs = [
            pl.BlockSpec((1, c, tl), lambda b, l: (0, 0, l)),  # batch-0 slice
            pl.BlockSpec((1, c, tl), lambda b, l: (b, 0, l)),  # current batch
        ]
        out_specs = pl.BlockSpec((1, c, tl), lambda b, l: (b, 0, l))
        kernel = functools.partial(_mean_center_axis1_kernel, inv_c=1.0 / c)
        operands = (x3, x3)
        block_bytes = 3 * c * tl * itemsize               # x0 + x + out blocks

    # Double-buffered footprint plus headroom; clamp so it also fits v7x
    # (64 MiB physical VMEM, 32 MiB scoped default).
    vmem_limit = int(min(max(4 * block_bytes + (1 << 20), 32 * 2**20),
                         48 * 2**20))

    out3 = pl.pallas_call(
        kernel,
        out_shape=jax.ShapeDtypeStruct(x3.shape, x3.dtype),
        grid=grid,
        in_specs=in_specs,
        out_specs=out_specs,
        compiler_params=pltpu.CompilerParams(
            dimension_semantics=("parallel",) * len(grid),
            vmem_limit_bytes=vmem_limit,
        ),
        cost_estimate=pl.CostEstimate(
            flops=2 * x3.size,
            transcendentals=0,
            bytes_accessed=2 * x3.size * itemsize,
        ),
    )(*operands)

    return out3.reshape(n, c, h, w)


def rescaled_dot_product(x, axis=1):
    """RescaledDotProduct.forward: rescaler(inner(x)).

    TODO(synk): `inner` is an abstract constructor-supplied dot-product module
    with no concrete forward in the spec; treated as identity here. The
    rescaler is the MeanCenter Pallas kernel above.
    """
    x = x  # inner(x) — identity hook
    return mean_center(x, axis)


if __name__ == "__main__":
    key = jax.random.PRNGKey(0)
    x = jax.random.normal(key, (2, 4, 16, 16), dtype=jnp.float32)

    # axis=1 (channel rescaler), the configuration used by MeanCenter(axis=1).
    out1 = jax.block_until_ready(rescaled_dot_product(x, axis=1))
    ref1 = x - jnp.mean(x, axis=1, keepdims=True)[0]
    assert out1.shape == x.shape and out1.dtype == x.dtype
    assert jnp.allclose(out1, ref1, atol=1e-5, rtol=1e-5)

    # axis=0 (batch) path.
    out0 = jax.block_until_ready(mean_center(x, axis=0))
    ref0 = x - jnp.mean(x, axis=0, keepdims=True)[0]
    assert jnp.allclose(out0, ref0, atol=1e-5, rtol=1e-5)

    print("KERNEL_OK")
</pallas_src>

<mosaic_0001>
module attributes {stable_mosaic.version = 11 : i64} {
  func.func @_mean_center_axis1_kernel(%arg0: i32, %arg1: i32, %arg2: memref<1x4x256xf32, #tpu.memory_space<vmem>>, %arg3: memref<1x4x256xf32, #tpu.memory_space<vmem>>, %arg4: memref<1x4x256xf32, #tpu.memory_space<vmem>>) attributes {dimension_semantics = [#tpu.dimension_semantics<parallel>, #tpu.dimension_semantics<parallel>], iteration_bounds = array<i64: 2, 1>, scalar_prefetch = 0 : i64, scratch_operands = 0 : i64, tpu.core_type = #tpu.core_type<tc>, window_params = [{transform_indices = @transform_0, window_bounds = array<i64: 1, 4, 256>}, {transform_indices = @transform_1, window_bounds = array<i64: 1, 4, 256>}, {transform_indices = @transform_2, window_bounds = array<i64: 1, 4, 256>}]} {
    %c0 = arith.constant 0 : index
    %c0_0 = arith.constant 0 : index
    %c0_1 = arith.constant 0 : index
    %0 = vector.load %arg2[%c0, %c0_0, %c0_1] : memref<1x4x256xf32, #tpu.memory_space<vmem>>, vector<1x4x256xf32>
    %cst = arith.constant dense<0.000000e+00> : vector<1x256xf32>
    %1 = vector.multi_reduction <add>, %0, %cst [1] : vector<1x4x256xf32> to vector<1x256xf32>
    %2 = vector.shape_cast %1 : vector<1x256xf32> to vector<1x1x256xf32>
    %cst_2 = arith.constant 2.500000e-01 : f32
    %3 = vector.broadcast %cst_2 : f32 to vector<1x1x256xf32>
    %4 = arith.mulf %2, %3 : vector<1x1x256xf32>
    %c0_3 = arith.constant 0 : index
    %c0_4 = arith.constant 0 : index
    %c0_5 = arith.constant 0 : index
    %5 = vector.load %arg3[%c0_3, %c0_4, %c0_5] : memref<1x4x256xf32, #tpu.memory_space<vmem>>, vector<1x4x256xf32>
    %6 = vector.broadcast %4 : vector<1x1x256xf32> to vector<1x4x256xf32>
    %7 = arith.subf %5, %6 : vector<1x4x256xf32>
    %c0_6 = arith.constant 0 : index
    %c0_7 = arith.constant 0 : index
    %c0_8 = arith.constant 0 : index
    %8 = vector.load %arg4[%c0_6, %c0_7, %c0_8] : memref<1x4x256xf32, #tpu.memory_space<vmem>>, vector<1x4x256xf32>
    tpu.vector_store %arg4[%c0_6, %c0_7, %c0_8], %7 {strides = array<i32>} : memref<1x4x256xf32, #tpu.memory_space<vmem>>, vector<1x4x256xf32>,
    return
  }
  func.func @transform_0(%arg0: i32, %arg1: i32) -> (i32, i32, i32) {
    %c0_i32 = arith.constant 0 : i32
    %c0_i32_0 = arith.constant 0 : i32
    %c0_i32_1 = arith.constant 0 : i32
    return %c0_i32, %c0_i32_0, %arg1 : i32, i32, i32
  }
  func.func @transform_1(%arg0: i32, %arg1: i32) -> (i32, i32, i32) {
    %c0_i32 = arith.constant 0 : i32
    %c0_i32_0 = arith.constant 0 : i32
    return %arg0, %c0_i32, %arg1 : i32, i32, i32
  }
  func.func @transform_2(%arg0: i32, %arg1: i32) -> (i32, i32, i32) {
    %c0_i32 = arith.constant 0 : i32
    %c0_i32_0 = arith.constant 0 : i32
    return %arg0, %c0_i32, %arg1 : i32, i32, i32
  }
}

</mosaic_0001>

<llo_original>
// kernel: tpu_custom_call.1
$region0: #{tpu_custom_call.1}
  #allocation0 [shape = 'u32[]', space=smem, size = 0x4, offset = 0x4, fixed_abs, tag = 'smem constant byte address 0x4 - core index']
  #allocation1 [shape = 'u32[144,128]{1,0:T(1,128)}', space=vmem, size = 0x12000, scoped, tag = 'internal scratch']
  %s0 = inlined_call_operand.hbm [shape: f32[2,4,256], index: 0, kind: input, shape index: {}]
  %s1 = inlined_call_operand.hbm [shape: f32[2,4,256], index: 1, kind: input, shape index: {}]
  %s2 = inlined_call_operand.hbm [shape: f32[2,4,256], index: 2, kind: output, shape index: {}]
  %s3 = sld [smem:[#allocation0]]
  $region49: #{tpu_custom_call.1} parent=0
    _
  %s5 = ssub.s32 1, %s3
  %s6 = scalar_select 0, %s5, %s3
  $region1: #{tpu_custom_call.1} parent=0
    #allocation2 [shape = 'u8[4096]{0}', space=vmem, size = 0x1000, scoped, tag = 'input window, operand 0, single buffered']
    #allocation3 [shape = 's32[2]{0}', space=sflag, size = 0x8, scoped, tag = 'scoped memory for tpu_custom_call.1']
    #allocation4 [shape = 's32[2]{0}', space=sflag, size = 0x8, scoped, tag = 'scoped memory for tpu_custom_call.1']
    #allocation5 [shape = 'u8[8192]{0}', space=vmem, size = 0x2000, scoped, tag = 'input window, operand 1']
    #allocation6 [shape = 's32[2]{0}', space=sflag, size = 0x8, scoped, tag = 'scoped memory for tpu_custom_call.1']
    #allocation7 [shape = 'u8[8192]{0}', space=vmem, size = 0x2000, scoped, tag = 'output window, operand 0']
    %7 = vsyncpa [#allocation3], 0
    %8 = vsyncpa [#allocation6], 0
    %s9 = scalar_lea.sflag [#allocation6], 1
    %10 = vsyncpa %s9, 0
    %11 = vsyncpa [#allocation4], 0
    %s12 = scalar_lea.sflag [#allocation4], 1
    %13 = vsyncpa %s12, 0
    loop: start=0, step=1, limit=4
    $region2: #{tpu_custom_call.1} parent=1 // loop_pre_header
      _
    $region3: #{tpu_custom_call.1} parent=1 // loop_header
      %s15 = sphi 0, %s19
      %p16 = scmp.ge.s32.totalorder %s15, 4
      %s22 = sphi 0, %s34
      %s23 = sphi 0, %s30
      %s24 = sphi 0, %s22
      %s25 = sphi 0, %s23
      %s26 = sphi 0, %s24
      %s27 = sphi 0, %s25
      %s37 = sphi 0, %s39
      %s40 = sphi 0, %s37
      %s41 = sphi 0, %s40
      %s57 = sphi 0, %s41
      %s65 = sphi 0, %s67
      %s68 = sphi 0, %s65
      %s69 = sphi 0, %s68
      %s85 = sphi 0, %s69
      %s93 = sphi 0, %s95
      %s96 = sphi 0, %s93
      %s97 = sphi 0, %s96
      %s113 = sphi 0, %s97
    $region4: #{tpu_custom_call.1} parent=1 // loop_header_branch
      %18 = sbr.rel (%p16) target = $region8
    $region5: #{tpu_custom_call.1} parent=1 // loop_body
      %s20 = ssub.s32 %s15, 1
      %s21 = ssub.s32 %s15, 2
      %s28 = sadd.s32 1, %s23
      %p29 = scmp.ge.s32.totalorder %s28, 1
      %s30 = scalar_select %p29, 0, %s28
      %s31 = sadd.s32 1, %s22
      %s32 = scalar_select %p29, %s31, %s22
      %p33 = scmp.ge.s32.totalorder %s32, 2
      %s34 = scalar_select %p33, 0, %s32
      %s35 = ssub.s32 %s23, %s30
      %p36 = scmp.eq.s32.totalorder %s35, 0
      %s38 = sadd.s32 %s37, 1
      %s39 = scalar_select %p36, %s37, %s38
      %p42 = pneg %p36
      %p43 = scmp.eq.s32.totalorder %s15, 1
      %p44 = por %p42, %p43
      %p45 = scmp.ne.s32.totalorder %s37, %s40
      %p46 = scmp.eq.s32.totalorder %s15, 0
      %p47 = por %p45, %p46
      %p48 = scmp.ne.s32.totalorder %s37, %s40
      %p49 = scmp.eq.s32.totalorder %s20, 1
      %p50 = por %p48, %p49
      %p51 = scmp.ne.s32.totalorder %s40, %s41
      %p52 = scmp.eq.s32.totalorder %s20, 0
      %p53 = por %p51, %p52
      %p54 = scmp.ne.s32.totalorder %s40, %s41
      %p55 = scmp.eq.s32.totalorder %s21, 1
      %p56 = por %p54, %p55
      %p58 = scmp.ne.s32.totalorder %s41, %s57
      %p59 = scmp.eq.s32.totalorder %s21, 0
      %p60 = por %p58, %p59
      %s61 = ssub.s32 %s22, %s34
      %s62 = ssub.s32 %s23, %s30
      %s63 = sor.u32 %s61, %s62
      %p64 = scmp.eq.s32.totalorder %s63, 0
      %s66 = sadd.s32 %s65, 1
      %s67 = scalar_select %p64, %s65, %s66
      %p70 = pneg %p64
      %p71 = scmp.eq.s32.totalorder %s15, 1
      %p72 = por %p70, %p71
      %p73 = scmp.ne.s32.totalorder %s65, %s68
      %p74 = scmp.eq.s32.totalorder %s15, 0
      %p75 = por %p73, %p74
      %p76 = scmp.ne.s32.totalorder %s65, %s68
      %p77 = scmp.eq.s32.totalorder %s20, 1
      %p78 = por %p76, %p77
      %p79 = scmp.ne.s32.totalorder %s68, %s69
      %p80 = scmp.eq.s32.totalorder %s20, 0
      %p81 = por %p79, %p80
      %p82 = scmp.ne.s32.totalorder %s68, %s69
      %p83 = scmp.eq.s32.totalorder %s21, 1
      %p84 = por %p82, %p83
      %p86 = scmp.ne.s32.totalorder %s69, %s85
      %p87 = scmp.eq.s32.totalorder %s21, 0
      %p88 = por %p86, %p87
      %s89 = ssub.s32 %s22, %s34
      %s90 = ssub.s32 %s23, %s30
      %s91 = sor.u32 %s89, %s90
      %p92 = scmp.eq.s32.totalorder %s91, 0
      %s94 = sadd.s32 %s93, 1
      %s95 = scalar_select %p92, %s93, %s94
      %p98 = pneg %p92
      %p99 = scmp.eq.s32.totalorder %s15, 1
      %p100 = por %p98, %p99
      %p101 = scmp.ne.s32.totalorder %s93, %s96
      %p102 = scmp.eq.s32.totalorder %s15, 0
      %p103 = por %p101, %p102
      %p104 = scmp.ne.s32.totalorder %s93, %s96
      %p105 = scmp.eq.s32.totalorder %s20, 1
      %p106 = por %p104, %p105
      %p107 = scmp.ne.s32.totalorder %s96, %s97
      %p108 = scmp.eq.s32.totalorder %s20, 0
      %p109 = por %p107, %p108
      %p110 = scmp.ne.s32.totalorder %s96, %s97
      %p111 = scmp.eq.s32.totalorder %s21, 1
      %p112 = por %p110, %p111
      %p114 = scmp.ne.s32.totalorder %s97, %s113
      %p115 = scmp.eq.s32.totalorder %s21, 0
      %p116 = por %p114, %p115
      %p117 = scmp.le.s32.totalorder 1, %s15
      %p118 = scmp.lt.s32.totalorder %s15, 3
      %p119 = pnand %p117, %p118
      %p120 = pneg %p119
      // Predicated region
      $region9: #{tpu_custom_call.1} parent=5 // pred_check
        _
      $region10: #{tpu_custom_call.1} parent=5 // pred_check_branch
        %122 = sbr.rel (%p119) target = $region12
      $region11: #{tpu_custom_call.1} parent=5 // pred_region
        %s123 = ssub.s32 %s15, 1
        // Predicated region
        $region13: #{tpu_custom_call.1} parent=11 // pred_check
          %p124 = pneg %p53
        $region14: #{tpu_custom_call.1} parent=11 // pred_check_branch
          %126 = sbr.rel (%p124) target = $region16
        $region15: #{tpu_custom_call.1} parent=11 // pred_region
          %s127 = smul.u32 2, %s25
          %s129 = ssub.s32 128, 128
          %130 = vsyncadd [#allocation3], %s129
          %s131 = smul.addr %s127, 64
          %s132 = scalar_lea.hbm %s0, %s131
          %s134 = sshll.u32 [#allocation2], 4
          %s135 = int_to_ptr.vmem [resolvable:$true] %s134
          %137 = dma.hbm_to_vmem [thread:$0]  %s132, 128, %s135, [#allocation3]
        $region16: #{tpu_custom_call.1} parent=11 // pred_fallthru
          _
      $region12: #{tpu_custom_call.1} parent=5 // pred_fallthru
        _
      %p138 = scmp.lt.s32.totalorder %s15, 2
      // Predicated region
      $region17: #{tpu_custom_call.1} parent=5 // pred_check
        %p139 = pneg %p138
      $region18: #{tpu_custom_call.1} parent=5 // pred_check_branch
        %141 = sbr.rel (%p139) target = $region20
      $region19: #{tpu_custom_call.1} parent=5 // pred_region
        // Predicated region
        $region21: #{tpu_custom_call.1} parent=19 // pred_check
          %p142 = pneg %p75
        $region22: #{tpu_custom_call.1} parent=19 // pred_check_branch
          %144 = sbr.rel (%p142) target = $region24
        $region23: #{tpu_custom_call.1} parent=19 // pred_region
          %s145 = sand.u32 %s65, 1
          %s146 = scalar_lea.sflag [#allocation6], %s145
          %s147 = sand.u32 %s65, 1
          %s148 = smul.addr %s147, 8
          %s149 = scalar_lea.vmem [#allocation5], %s148
          %s150 = smul.u32 2, %s23
          %s152 = ssub.s32 128, 128
          %153 = vsyncadd %s146, %s152
          %s154 = smul.addr %s22, 2
          %s155 = sadd.s32 %s150, %s154
          %s156 = smul.addr %s155, 64
          %s157 = scalar_lea.hbm %s1, %s156
          %s159 = sshll.u32 %s149, 4
          %s160 = int_to_ptr.vmem [resolvable:$true] %s159
          %162 = dma.hbm_to_vmem [thread:$0]  %s157, 128, %s160, %s146
        $region24: #{tpu_custom_call.1} parent=19 // pred_fallthru
          _
      $region20: #{tpu_custom_call.1} parent=5 // pred_fallthru
        _
      %p163 = scmp.le.s32.totalorder 1, %s15
      %p164 = scmp.lt.s32.totalorder %s15, 3
      %p165 = pnand %p163, %p164
      %p166 = pneg %p165
      // Predicated region
      $region25: #{tpu_custom_call.1} parent=5 // pred_check
        _
      $region26: #{tpu_custom_call.1} parent=5 // pred_check_branch
        %168 = sbr.rel (%p165) target = $region28
      $region27: #{tpu_custom_call.1} parent=5 // pred_region
        %s169 = ssub.s32 %s15, 1
        // Predicated region
        $region29: #{tpu_custom_call.1} parent=27 // pred_check
          %p170 = pneg %p53
        $region30: #{tpu_custom_call.1} parent=27 // pred_check_branch
          %172 = sbr.rel (%p170) target = $region32
        $region31: #{tpu_custom_call.1} parent=27 // pred_region
          %173 = dma.done [#allocation3], 128
        $region32: #{tpu_custom_call.1} parent=27 // pred_fallthru
          _
        %s174 = sand.u32 %s68, 1
        %s175 = scalar_lea.sflag [#allocation6], %s174
        %s176 = sand.u32 %s68, 1
        %s177 = smul.addr %s176, 8
        %s178 = scalar_lea.vmem [#allocation5], %s177
        // Predicated region
        $region33: #{tpu_custom_call.1} parent=27 // pred_check
          %p179 = pneg %p81
        $region34: #{tpu_custom_call.1} parent=27 // pred_check_branch
          %181 = sbr.rel (%p179) target = $region36
        $region35: #{tpu_custom_call.1} parent=27 // pred_region
          %182 = dma.done %s175, 128
        $region36: #{tpu_custom_call.1} parent=27 // pred_fallthru
          _
        %p183 = pneg %p53
        %p184 = pneg %p50
        %s185 = sand.u32 %s68, 1
        %s186 = scalar_lea.sflag [#allocation6], %s185
        %s187 = sand.u32 %s68, 1
        %s188 = smul.addr %s187, 8
        %s189 = scalar_lea.vmem [#allocation5], %s188
        %p190 = pneg %p81
        %p191 = pneg %p78
        %p192 = pneg %p109
        %p193 = pneg %p106
        %s194 = sand.u32 %s96, 1
        %s195 = scalar_lea.sflag [#allocation4], %s194
        %s196 = sand.u32 %s96, 1
        %s197 = smul.addr %s196, 8
        %s198 = scalar_lea.vmem [#allocation7], %s197
        %s199 = smul.u32 2, %s25
        %s200 = smul.u32 2, %s25
        %s201 = smul.u32 2, %s25
        %v202 = vld [vmem:[#allocation2] sm:$0xff]
        %v204 = vcombine.high %v202, %v202
        %vm206 = vcmask 1043456
        %v207 = vsel %vm206, %v202, 0.0
        %v208 = vrot.slane %v207, 4
        %v209 = vadd.f32 %v207, %v208
        %v210 = vrot.slane %v209, 2
        %v211 = vadd.f32 %v209, %v210
        %v212 = vrot.slane %v211, 1
        %v213 = vadd.f32 %v211, %v212
        %v214 = vsel %vm206, %v204, 0.0
        %v215 = vrot.slane %v214, 4
        %v216 = vadd.f32 %v214, %v215
        %v217 = vrot.slane %v216, 2
        %v218 = vadd.f32 %v216, %v217
        %v219 = vrot.slane %v218, 1
        %v220 = vadd.f32 %v218, %v219
        %v221 = vmul.f32 %v213, 0.25
        %v222 = vmul.f32 %v220, 0.25
        %v223 = vld [vmem:[%s178] sm:$0xff]
        %v226 = vcombine.low %v221, %v222
        %v228 = vsub.f32 %v223, %v226
        %229 = vst [vmem:[%s198] sm:$0xff] %v228
        %s230 = sand.u32 %s96, 1
        %s231 = scalar_lea.sflag [#allocation4], %s230
        %s232 = sand.u32 %s96, 1
        %s233 = smul.addr %s232, 8
        %s234 = scalar_lea.vmem [#allocation7], %s233
        // Predicated region
        $region37: #{tpu_custom_call.1} parent=27 // pred_check
          %p235 = pneg %p106
        $region38: #{tpu_custom_call.1} parent=27 // pred_check_branch
          %237 = sbr.rel (%p235) target = $region40
        $region39: #{tpu_custom_call.1} parent=27 // pred_region
          %s238 = smul.u32 2, %s25
          %s240 = ssub.s32 128, 128
          %241 = vsyncadd %s231, %s240
          %s242 = smul.addr %s24, 2
          %s243 = sadd.s32 %s238, %s242
          %s244 = smul.addr %s243, 64
          %s245 = scalar_lea.hbm %s2, %s244
          %s247 = sshll.u32 %s234, 4
          %s248 = int_to_ptr.vmem [resolvable:$true] %s247
          %250 = dma.vmem_to_hbm [thread:$0]  %s248, 128, %s245, %s231
        $region40: #{tpu_custom_call.1} parent=27 // pred_fallthru
          _
      $region28: #{tpu_custom_call.1} parent=5 // pred_fallthru
        _
      %p251 = scmp.le.s32.totalorder 2, %s15
      // Predicated region
      $region41: #{tpu_custom_call.1} parent=5 // pred_check
        %p252 = pneg %p251
      $region42: #{tpu_custom_call.1} parent=5 // pred_check_branch
        %254 = sbr.rel (%p252) target = $region44
      $region43: #{tpu_custom_call.1} parent=5 // pred_region
        %s255 = ssub.s32 %s15, 2
        // Predicated region
        $region45: #{tpu_custom_call.1} parent=43 // pred_check
          %p256 = pneg %p112
        $region46: #{tpu_custom_call.1} parent=43 // pred_check_branch
          %258 = sbr.rel (%p256) target = $region48
        $region47: #{tpu_custom_call.1} parent=43 // pred_region
          %s259 = sand.u32 %s97, 1
          %s260 = scalar_lea.sflag [#allocation4], %s259
          %s261 = sand.u32 %s97, 1
          %s262 = smul.addr %s261, 8
          %s263 = scalar_lea.vmem [#allocation7], %s262
          %264 = dma.done %s260, 128
        $region48: #{tpu_custom_call.1} parent=43 // pred_fallthru
          _
      $region44: #{tpu_custom_call.1} parent=5 // pred_fallthru
        _
    $region6: #{tpu_custom_call.1} parent=1 // loop_footer
      %s19 = sadd.s32 1, %s15
    $region7: #{tpu_custom_call.1} parent=1 // loop_footer_branch
      %14 = sbr.rel target = $region3
    $region8: #{tpu_custom_call.1} parent=1 // loop_exit
      _
    %265 = vsyncpa [#allocation3], 1
    %s266 = scalar_lea.sflag [#allocation3], 1
    %267 = vsyncpa %s266, 1
    %268 = vsyncpa [#allocation6], 1
    %s269 = scalar_lea.sflag [#allocation6], 1
    %270 = vsyncpa %s269, 1
    %271 = vsyncpa [#allocation4], 1
    %s272 = scalar_lea.sflag [#allocation4], 1
    %273 = vsyncpa %s272, 1

</llo_original>
